<compile_context>
chip_gen: v7x
topology: tpu7x:2x2x1
jax: 0.10.0
libtpu: 0.0.40
codegen_flags: <defaults>
</compile_context>

<pallas_src>
import functools

import jax
import jax.numpy as jnp
from jax.experimental import pallas as pl
from jax.experimental.pallas import tpu as pltpu

LANE = 128      # lane width: padded hidden & action dims
HIDDEN = 64     # logical hidden size of the DQN MLP
SMALL_BATCH = 256   # <= this (after padding): single grid tile
TM_CAP = 2048       # max rows per tile (keeps per-tile VMEM at a few MiB)


def _round_up(n, m):
    return ((n + m - 1) // m) * m


@functools.lru_cache(maxsize=1)
def _bf16_vpu_ok():
    """True on chips with a bf16 VPU (v6e/v7x); False on v5e and older."""
    try:
        kind = jax.devices()[0].device_kind.lower()
    except Exception:
        return False
    for old in ("v2", "v3", "v4", "v5"):
        if old in kind:
            return False
    return True


def dqn_kernel(x_ref, w1_ref, w23_ref, b_ref, out_ref, *, bf16_compute):
    """One batch tile: fc1 -> relu -> fc2 -> relu -> fc3 (all lane-padded to 128)."""
    act_dt = jnp.bfloat16 if bf16_compute else jnp.float32

    def hidden_layer(h_bf16, w_bf16, bias_row):
        acc = jnp.dot(h_bf16, w_bf16, preferred_element_type=jnp.float32)
        a = jnp.maximum(acc.astype(act_dt) + b_ref[bias_row:bias_row + 1, :].astype(act_dt), 0)
        return a.astype(jnp.bfloat16)     # no-op on the bf16 path

    x = x_ref[...].astype(jnp.bfloat16)
    h1 = hidden_layer(x, w1_ref[...], 0)
    h2 = hidden_layer(h1, w23_ref[0], 1)
    out = jnp.dot(h2, w23_ref[1], preferred_element_type=jnp.float32) + b_ref[2:3, :]
    out_ref[...] = out.astype(out_ref.dtype)


def prepare_params(params):
    """Zero-pad hidden/action dims to 128 lanes (and state dim to a multiple of 16),
    cast weights to bf16, pack arrays.

    params: w1 (S,64), b1 (64,), w2 (64,64), b2 (64,), w3 (64,A), b3 (A,)
    (weights already transposed relative to PyTorch's (out, in) layout).
    Padded weight columns / bias entries are zero, so padded lanes stay zero
    through ReLU and never leak into the sliced result.
    """
    w1, b1 = params["w1"], params["b1"]
    w2, b2 = params["w2"], params["b2"]
    w3, b3 = params["w3"], params["b3"]
    state_dim = w1.shape[0]
    action_dim = w3.shape[1]
    s_pad = _round_up(state_dim, 16)   # native bf16 sublane tile for the fc1 weight block

    w1p = jnp.zeros((s_pad, LANE), jnp.float32).at[:state_dim, :HIDDEN].set(w1)
    w2p = jnp.zeros((LANE, LANE), jnp.float32).at[:HIDDEN, :HIDDEN].set(w2)
    w3p = jnp.zeros((LANE, LANE), jnp.float32).at[:HIDDEN, :action_dim].set(w3)

    b = jnp.zeros((3, LANE), jnp.float32)
    b = b.at[0, :HIDDEN].set(b1)
    b = b.at[1, :HIDDEN].set(b2)
    b = b.at[2, :action_dim].set(b3)

    return {
        "w1": w1p.astype(jnp.bfloat16),                     # (S_pad, 128)  bf16
        "w23": jnp.stack([w2p, w3p]).astype(jnp.bfloat16),  # (2, 128, 128) bf16
        "b": b,                                             # (3, 128)      f32
        "state_dim": int(state_dim),
        "action_dim": int(action_dim),
    }


@functools.partial(jax.jit, static_argnames=("action_dim", "bf16_compute"))
def _dqn_forward_padded(x, w1, w23, b, *, action_dim, bf16_compute):
    B, S = x.shape
    S_pad = w1.shape[0]
    out_dtype = jnp.bfloat16 if bf16_compute else jnp.float32

    # --- tile selection: pad rows only to a multiple of 16, pick TM that exactly
    # tiles the padded batch; >=2 tiles for training-sized batches (v7x 2-TC),
    # capped at TM_CAP rows per tile for very large replay batches. ---
    B16 = _round_up(B, 16)
    n_tiles = 1 if B16 <= SMALL_BATCH else max(2, pl.cdiv(B16, TM_CAP))
    TM = _round_up(pl.cdiv(B16, n_tiles), 16)
    B_pad = TM * n_tiles

    if B_pad != B or S_pad != S:
        x = jnp.pad(x, ((0, B_pad - B), (0, S_pad - S)))

    flops = 2 * B_pad * (S_pad * LANE + LANE * LANE + LANE * LANE)
    bytes_accessed = (B_pad * S_pad * 4                                  # x
                      + B_pad * LANE * jnp.dtype(out_dtype).itemsize     # out
                      + w1.size * 2 + w23.size * 2 + b.size * 4)         # params

    out = pl.pallas_call(
        functools.partial(dqn_kernel, bf16_compute=bf16_compute),
        out_shape=jax.ShapeDtypeStruct((B_pad, LANE), out_dtype),
        grid=(n_tiles,),
        in_specs=[
            # Activations: one batch tile per grid step (double-buffered).
            pl.BlockSpec((TM, S_pad), lambda i: (i, 0)),
            # Weights / biases: constant block index -> stay VMEM-resident.
            pl.BlockSpec(w1.shape, lambda i: (0, 0)),
            pl.BlockSpec(w23.shape, lambda i: (0, 0, 0)),
            pl.BlockSpec(b.shape, lambda i: (0, 0)),
        ],
        out_specs=pl.BlockSpec((TM, LANE), lambda i: (i, 0)),
        compiler_params=pltpu.CompilerParams(
            dimension_semantics=("parallel",),  # shard batch tiles across TCs (v7x)
        ),
        cost_estimate=pl.CostEstimate(
            flops=int(flops), transcendentals=0, bytes_accessed=int(bytes_accessed)),
    )(x, w1, w23, b)

    # Drop batch/lane padding (padded lanes are exactly zero + zero bias).
    return out[:B, :action_dim].astype(jnp.float32)


@jax.jit
def _dqn_forward_jnp(x, w1, w23, b):
    """Tiny-batch (action-selection) path: plain fused XLA, same math."""
    s_pad = w1.shape[0]
    if x.shape[1] != s_pad:
        x = jnp.pad(x, ((0, 0), (0, s_pad - x.shape[1])))
    h = jnp.maximum(jnp.dot(x.astype(jnp.bfloat16), w1,
                            preferred_element_type=jnp.float32) + b[0], 0.0)
    h = jnp.maximum(jnp.dot(h.astype(jnp.bfloat16), w23[0],
                            preferred_element_type=jnp.float32) + b[1], 0.0)
    return jnp.dot(h.astype(jnp.bfloat16), w23[1],
                   preferred_element_type=jnp.float32) + b[2]


def dqn_forward(x, packed, *, force_pallas=False):
    """x: (B, state_dim) f32; packed: output of prepare_params. Returns (B, action_dim) f32."""
    B = x.shape[0]
    if not force_pallas and B < 16:
        # Dispatch overhead dominates at B~1-8; use the fused XLA path there.
        return _dqn_forward_jnp(x, packed["w1"], packed["w23"], packed["b"])[:, :packed["action_dim"]]
    return _dqn_forward_padded(x, packed["w1"], packed["w23"], packed["b"],
                               action_dim=packed["action_dim"],
                               bf16_compute=_bf16_vpu_ok())


def init_params(key, state_dim, action_dim, hidden=HIDDEN):
    """Deterministic init mimicking nn.Linear's U(-1/sqrt(fan_in), 1/sqrt(fan_in))."""
    ks = jax.random.split(key, 6)

    def linear(kw, kb, fan_in, fan_out):
        bound = 1.0 / float(fan_in) ** 0.5
        w = jax.random.uniform(kw, (fan_in, fan_out), jnp.float32, -bound, bound)
        b = jax.random.uniform(kb, (fan_out,), jnp.float32, -bound, bound)
        return w, b

    w1, b1 = linear(ks[0], ks[1], state_dim, hidden)
    w2, b2 = linear(ks[2], ks[3], hidden, hidden)
    w3, b3 = linear(ks[4], ks[5], hidden, action_dim)
    return {"w1": w1, "b1": b1, "w2": w2, "b2": b2, "w3": w3, "b3": b3}


def dqn_reference(x, p, *, bf16_compute):
    """Pure-JAX reference mirroring the kernel's bf16-matmul / f32-acc math."""
    act_dt = jnp.bfloat16 if bf16_compute else jnp.float32

    def dot(a, w):
        return jnp.dot(a.astype(jnp.bfloat16), w.astype(jnp.bfloat16),
                       preferred_element_type=jnp.float32)

    h = jnp.maximum(dot(x, p["w1"]).astype(act_dt) + p["b1"].astype(act_dt), 0).astype(jnp.float32)
    h = jnp.maximum(dot(h, p["w2"]).astype(act_dt) + p["b2"].astype(act_dt), 0).astype(jnp.float32)
    return dot(h, p["w3"]) + p["b3"]


if __name__ == "__main__":
    key = jax.random.PRNGKey(0)
    k_x, k_p, k_big = jax.random.split(key, 3)

    batch, state_dim, action_dim = 8, 8, 4
    params = init_params(k_p, state_dim, action_dim)
    packed = prepare_params(params)
    bf16 = _bf16_vpu_ok()

    # Small batch, forced through the Pallas kernel (single 16-row tile).
    x = jax.random.normal(k_x, (batch, state_dim), jnp.float32)
    out = jax.block_until_ready(dqn_forward(x, packed, force_pallas=True))
    ref = dqn_reference(x, params, bf16_compute=bf16)
    assert out.shape == (batch, action_dim)
    assert jnp.allclose(out, ref, atol=2e-2, rtol=2e-2), "mismatch vs reference (small batch)"

    # Replay-buffer-sized batch: now 2 tiles of 304 rows (600 padded to 608, not 1024),
    # exercising batch tiling, megacore sharding, and the bf16 VPU/output path.
    x_big = jax.random.normal(k_big, (600, state_dim), jnp.float32)
    out_big = jax.block_until_ready(dqn_forward(x_big, packed))
    ref_big = dqn_reference(x_big, params, bf16_compute=bf16)
    assert out_big.shape == (600, action_dim)
    assert jnp.allclose(out_big, ref_big, atol=2e-2, rtol=2e-2), "mismatch vs reference (large batch)"

    print("KERNEL_OK")
</pallas_src>

<mosaic_0001>
module attributes {stable_mosaic.version = 11 : i64} {
  func.func @dqn_kernel(%arg0: i32, %arg1: memref<16x16xf32, #tpu.memory_space<vmem>>, %arg2: memref<16x128xbf16, #tpu.memory_space<vmem>>, %arg3: memref<2x128x128xbf16, #tpu.memory_space<vmem>>, %arg4: memref<3x128xf32, #tpu.memory_space<vmem>>, %arg5: memref<16x128xbf16, #tpu.memory_space<vmem>>) attributes {dimension_semantics = [#tpu.dimension_semantics<parallel>], iteration_bounds = array<i64: 1>, scalar_prefetch = 0 : i64, scratch_operands = 0 : i64, tpu.core_type = #tpu.core_type<tc>, window_params = [{transform_indices = @transform_0, window_bounds = array<i64: 16, 16>}, {pipeline_mode = #tpu.pipeline_mode<synchronous>, transform_indices = @transform_1, window_bounds = array<i64: 16, 128>}, {pipeline_mode = #tpu.pipeline_mode<synchronous>, transform_indices = @transform_2, window_bounds = array<i64: 2, 128, 128>}, {pipeline_mode = #tpu.pipeline_mode<synchronous>, transform_indices = @transform_3, window_bounds = array<i64: 3, 128>}, {transform_indices = @transform_4, window_bounds = array<i64: 16, 128>}]} {
    %c0 = arith.constant 0 : index
    %c0_0 = arith.constant 0 : index
    %0 = vector.load %arg1[%c0, %c0_0] : memref<16x16xf32, #tpu.memory_space<vmem>>, vector<16x16xf32>
    %1 = arith.truncf %0 : vector<16x16xf32> to vector<16x16xbf16>
    %c0_1 = arith.constant 0 : index
    %c0_2 = arith.constant 0 : index
    %2 = vector.load %arg2[%c0_1, %c0_2] : memref<16x128xbf16, #tpu.memory_space<vmem>>, vector<16x128xbf16>
    %cst = arith.constant dense<0.000000e+00> : vector<16x128xf32>
    %3 = tpu.matmul %1, %2, %cst {dimension_numbers = #tpu.dot_dimension_numbers<[1], [0], [0], [1], [0, 0, 1, 1], [], []>} : vector<16x16xbf16>, vector<16x128xbf16>, vector<16x128xf32> -> vector<16x128xf32>
    %4 = arith.truncf %3 : vector<16x128xf32> to vector<16x128xbf16>
    %c0_3 = arith.constant 0 : index
    %c0_4 = arith.constant 0 : index
    %5 = vector.load %arg4[%c0_3, %c0_4] : memref<3x128xf32, #tpu.memory_space<vmem>>, vector<1x128xf32>
    %6 = arith.truncf %5 : vector<1x128xf32> to vector<1x128xbf16>
    %7 = vector.broadcast %6 : vector<1x128xbf16> to vector<16x128xbf16>
    %8 = arith.addf %4, %7 : vector<16x128xbf16>
    %cst_5 = arith.constant 0.000000e+00 : bf16
    %9 = vector.broadcast %cst_5 : bf16 to vector<16x128xbf16>
    %10 = arith.maximumf %8, %9 : vector<16x128xbf16>
    %c0_6 = arith.constant 0 : index
    %c0_7 = arith.constant 0 : index
    %c0_8 = arith.constant 0 : index
    %11 = vector.load %arg3[%c0_6, %c0_7, %c0_8] : memref<2x128x128xbf16, #tpu.memory_space<vmem>>, vector<1x128x128xbf16>
    %12 = vector.shape_cast %11 : vector<1x128x128xbf16> to vector<128x128xbf16>
    %cst_9 = arith.constant dense<0.000000e+00> : vector<16x128xf32>
    %13 = tpu.matmul %10, %12, %cst_9 {dimension_numbers = #tpu.dot_dimension_numbers<[1], [0], [0], [1], [0, 0, 1, 1], [], []>} : vector<16x128xbf16>, vector<128x128xbf16>, vector<16x128xf32> -> vector<16x128xf32>
    %14 = arith.truncf %13 : vector<16x128xf32> to vector<16x128xbf16>
    %c1 = arith.constant 1 : index
    %c0_10 = arith.constant 0 : index
    %15 = vector.load %arg4[%c1, %c0_10] : memref<3x128xf32, #tpu.memory_space<vmem>>, vector<1x128xf32>
    %16 = arith.truncf %15 : vector<1x128xf32> to vector<1x128xbf16>
    %17 = vector.broadcast %16 : vector<1x128xbf16> to vector<16x128xbf16>
    %18 = arith.addf %14, %17 : vector<16x128xbf16>
    %cst_11 = arith.constant 0.000000e+00 : bf16
    %19 = vector.broadcast %cst_11 : bf16 to vector<16x128xbf16>
    %20 = arith.maximumf %18, %19 : vector<16x128xbf16>
    %c1_12 = arith.constant 1 : index
    %c0_13 = arith.constant 0 : index
    %c0_14 = arith.constant 0 : index
    %21 = vector.load %arg3[%c1_12, %c0_13, %c0_14] : memref<2x128x128xbf16, #tpu.memory_space<vmem>>, vector<1x128x128xbf16>
    %22 = vector.shape_cast %21 : vector<1x128x128xbf16> to vector<128x128xbf16>
    %cst_15 = arith.constant dense<0.000000e+00> : vector<16x128xf32>
    %23 = tpu.matmul %20, %22, %cst_15 {dimension_numbers = #tpu.dot_dimension_numbers<[1], [0], [0], [1], [0, 0, 1, 1], [], []>} : vector<16x128xbf16>, vector<128x128xbf16>, vector<16x128xf32> -> vector<16x128xf32>
    %c2 = arith.constant 2 : index
    %c0_16 = arith.constant 0 : index
    %24 = vector.load %arg4[%c2, %c0_16] : memref<3x128xf32, #tpu.memory_space<vmem>>, vector<1x128xf32>
    %25 = vector.broadcast %24 : vector<1x128xf32> to vector<16x128xf32>
    %26 = arith.addf %23, %25 : vector<16x128xf32>
    %27 = arith.truncf %26 : vector<16x128xf32> to vector<16x128xbf16>
    %c0_17 = arith.constant 0 : index
    %c0_18 = arith.constant 0 : index
    %28 = vector.load %arg5[%c0_17, %c0_18] : memref<16x128xbf16, #tpu.memory_space<vmem>>, vector<16x128xbf16>
    tpu.vector_store %arg5[%c0_17, %c0_18], %27 {strides = array<i32>} : memref<16x128xbf16, #tpu.memory_space<vmem>>, vector<16x128xbf16>,
    return
  }
  func.func @transform_0(%arg0: i32) -> (i32, i32) {
    %c0_i32 = arith.constant 0 : i32
    %c0_i32_0 = arith.constant 0 : i32
    return %arg0, %c0_i32 : i32, i32
  }
  func.func @transform_1(%arg0: i32) -> (i32, i32) {
    %c0_i32 = arith.constant 0 : i32
    %c0_i32_0 = arith.constant 0 : i32
    %c0_i32_1 = arith.constant 0 : i32
    return %c0_i32, %c0_i32_0 : i32, i32
  }
  func.func @transform_2(%arg0: i32) -> (i32, i32, i32) {
    %c0_i32 = arith.constant 0 : i32
    %c0_i32_0 = arith.constant 0 : i32
    %c0_i32_1 = arith.constant 0 : i32
    %c0_i32_2 = arith.constant 0 : i32
    return %c0_i32, %c0_i32_0, %c0_i32_1 : i32, i32, i32
  }
  func.func @transform_3(%arg0: i32) -> (i32, i32) {
    %c0_i32 = arith.constant 0 : i32
    %c0_i32_0 = arith.constant 0 : i32
    %c0_i32_1 = arith.constant 0 : i32
    return %c0_i32, %c0_i32_0 : i32, i32
  }
  func.func @transform_4(%arg0: i32) -> (i32, i32) {
    %c0_i32 = arith.constant 0 : i32
    %c0_i32_0 = arith.constant 0 : i32
    return %arg0, %c0_i32 : i32, i32
  }
}

</mosaic_0001>

<llo_original>
// kernel: _dqn_forward_padded.1
$region0: #{_dqn_forward_padded.1}
  #allocation0 [shape = 'u32[]', space=smem, size = 0x4, offset = 0x4, fixed_abs, tag = 'smem constant byte address 0x4 - core index']
  #allocation1 [shape = 'u32[144,128]{1,0:T(1,128)}', space=vmem, size = 0x12000, scoped, tag = 'internal scratch']
  %s0 = inlined_call_operand.vmem [shape: f32[16,16], index: 0, kind: input, shape index: {}]
  %s1 = inlined_call_operand.vmem [shape: bf16[16,128], index: 1, kind: input, shape index: {}]
  %s2 = inlined_call_operand.hbm [shape: bf16[2,128,128], index: 2, kind: input, shape index: {}]
  %s3 = inlined_call_operand.vmem [shape: f32[3,128], index: 3, kind: input, shape index: {}]
  %s4 = inlined_call_operand.vmem [shape: bf16[16,128], index: 4, kind: output, shape index: {}]
  %s5 = sld [smem:[#allocation0]]
  $region30: #{_dqn_forward_padded.1} parent=0
    _
  %s7 = ssub.s32 1, %s5
  %s8 = scalar_select 0, %s7, %s5
  $region1: #{_dqn_forward_padded.1} parent=0
    #allocation2 [shape = 'u8[65536]{0}', space=vmem, size = 0x10000, scoped, tag = 'input window, operand 2, single buffered']
    #allocation3 [shape = 's32[1]{0}', space=sflag, size = 0x4, scoped, tag = 'scoped memory for _dqn_forward_padded.1']
    %9 = vsyncpa [#allocation3], 0
    // Predicated region
    $region2: #{_dqn_forward_padded.1} parent=1 // pred_check
      _
    $region3: #{_dqn_forward_padded.1} parent=1 // pred_check_branch
      %11 = sbr.rel (0) target = $region5
    $region4: #{_dqn_forward_padded.1} parent=1 // pred_region
      _
    $region5: #{_dqn_forward_padded.1} parent=1 // pred_fallthru
      _
    // Predicated region
    $region6: #{_dqn_forward_padded.1} parent=1 // pred_check
      _
    $region7: #{_dqn_forward_padded.1} parent=1 // pred_check_branch
      %13 = sbr.rel (0) target = $region9
    $region8: #{_dqn_forward_padded.1} parent=1 // pred_region
      _
    $region9: #{_dqn_forward_padded.1} parent=1 // pred_fallthru
      _
    // Predicated region
    $region10: #{_dqn_forward_padded.1} parent=1 // pred_check
      _
    $region11: #{_dqn_forward_padded.1} parent=1 // pred_check_branch
      %15 = sbr.rel (0) target = $region13
    $region12: #{_dqn_forward_padded.1} parent=1 // pred_region
      %s17 = ssub.s32 2048, 2048
      %18 = vsyncadd [#allocation3], %s17
      %s19 = sshll.u32 [#allocation2], 4
      %s20 = int_to_ptr.vmem [resolvable:$true] %s19
      %25 = dma.hbm_to_vmem [thread:$0]  %s2, 2048, %s20, [#allocation3], 64, 64, 4
    $region13: #{_dqn_forward_padded.1} parent=1 // pred_fallthru
      _
    // Predicated region
    $region14: #{_dqn_forward_padded.1} parent=1 // pred_check
      _
    $region15: #{_dqn_forward_padded.1} parent=1 // pred_check_branch
      %27 = sbr.rel (0) target = $region17
    $region16: #{_dqn_forward_padded.1} parent=1 // pred_region
      _
    $region17: #{_dqn_forward_padded.1} parent=1 // pred_fallthru
      _
    // Predicated region
    $region18: #{_dqn_forward_padded.1} parent=1 // pred_check
      _
    $region19: #{_dqn_forward_padded.1} parent=1 // pred_check_branch
      %29 = sbr.rel (0) target = $region21
    $region20: #{_dqn_forward_padded.1} parent=1 // pred_region
      %30 = dma.done [#allocation3], 2048
    $region21: #{_dqn_forward_padded.1} parent=1 // pred_fallthru
      _
    %v32 = vld [vmem:[%s0] sm:$0xff]
    %v33 = vld [vmem:[%s0 + $0x8] sm:$0xff]
    %v34 = vpack.c.bf16 %v33, %v32
    %v35 = vld [vmem:[%s1] sm:$0xf]
    %v36 = vld [vmem:[%s1 + $0x4] sm:$0xf]
    %v39 = vunpack.c.l.b16 %v35
    %v40 = vunpack.c.l.b16 %v36
    %v41 = vpack.c.b16 %v40, %v39
    %vm43 = vcmask 130048
    %v45 = vsel %vm43, %v34, 0
    %47 = vmatprep.subr.bf16.mxu0 0
    %48 = vmatpush1.bf16.msra.mxu0 %v41
    %49 = vmatprep.subr.bf16.mxu0 0
    %50 = vmatpush1.bf16.msra.mxu0 0
    %51 = vmatprep.subr.bf16.mxu0 0
    %52 = vmatpush1.bf16.msra.mxu0 0
    %53 = vmatprep.subr.bf16.mxu0 0
    %54 = vmatpush1.bf16.msra.mxu0 0
    %55 = vmatprep.subr.bf16.mxu0 0
    %56 = vmatpush1.bf16.msra.mxu0 0
    %57 = vmatprep.subr.bf16.mxu0 0
    %58 = vmatpush1.bf16.msra.mxu0 0
    %59 = vmatprep.subr.bf16.mxu0 0
    %60 = vmatpush1.bf16.msra.mxu0 0
    %61 = vmatprep.subr.bf16.mxu0 0
    %62 = vmatpush1.bf16.msra.mxu0 0
    %63 = vmatprep.subr.bf16.mxu0 0
    %64 = vmatpush1.bf16.msra.mxu0 0
    %65 = vmatprep.subr.bf16.mxu0 0
    %66 = vmatpush1.bf16.msra.mxu0 0
    %67 = vmatprep.subr.bf16.mxu0 0
    %68 = vmatpush1.bf16.msra.mxu0 0
    %69 = vmatprep.subr.bf16.mxu0 0
    %70 = vmatpush1.bf16.msra.mxu0 0
    %71 = vmatprep.subr.bf16.mxu0 0
    %72 = vmatpush1.bf16.msra.mxu0 0
    %73 = vmatprep.subr.bf16.mxu0 0
    %74 = vmatpush1.bf16.msra.mxu0 0
    %75 = vmatprep.subr.bf16.mxu0 0
    %76 = vmatpush1.bf16.msra.mxu0 0
    %77 = vmatprep.subr.bf16.mxu0 0
    %78 = vmatpush1.bf16.msra.mxu0 0
    %79 = vmatprep.mubr.bf16.mxu0 0
    %80 = vmatmul.mubr.bf16.gmra.mrb[0].mxu0 %v45
    %v81 = vpop.f32.mrb[0].mxu0
    %v82 = vadd.f32 0.0, %v81
    %v83 = vpop.f32.mrb[0].mxu0
    %v84 = vpop.f32.mrb[0].mxu0
    %v85 = vadd.f32 0.0, %v84
    %v86 = vpop.f32.mrb[0].mxu0
    %87 = vdwg.mxu0
    %v88 = vpack.c.bf16 %v85, %v82
    %v89 = vld [vmem:[%s3] sm:$0x1]
    %v90 = vpack.c.bf16 %v89, %v89
    %v92 = vpack.i.b16 %v90, %v90
    %v94 = vlaneseq
    %v95 = vshrl.u32 %v94, 7
    %v96 = vsub.s32 0, %v95
    %v97 = vrot.slane %v92, %v96
    %v98 = vadd.bf16 %v88, %v97
    %v99 = vmax.bf16 %v98, 0
    %v100 = vld [vmem:[#allocation2] sm:$0xf]
    %v101 = vld [vmem:[#allocation2 + $0x4] sm:$0xf]
    %v102 = vld [vmem:[#allocation2 + $0x8] sm:$0xf]
    %v103 = vld [vmem:[#allocation2 + $0xc] sm:$0xf]
    %v104 = vld [vmem:[#allocation2 + $0x10] sm:$0xf]
    %v105 = vld [vmem:[#allocation2 + $0x14] sm:$0xf]
    %v106 = vld [vmem:[#allocation2 + $0x18] sm:$0xf]
    %v107 = vld [vmem:[#allocation2 + $0x1c] sm:$0xf]
    %v108 = vld [vmem:[#allocation2 + $0x20] sm:$0xf]
    %v109 = vld [vmem:[#allocation2 + $0x24] sm:$0xf]
    %v110 = vld [vmem:[#allocation2 + $0x28] sm:$0xf]
    %v111 = vld [vmem:[#allocation2 + $0x2c] sm:$0xf]
    %v112 = vld [vmem:[#allocation2 + $0x30] sm:$0xf]
    %v113 = vld [vmem:[#allocation2 + $0x34] sm:$0xf]
    %v114 = vld [vmem:[#allocation2 + $0x38] sm:$0xf]
    %v115 = vld [vmem:[#allocation2 + $0x3c] sm:$0xf]
    %v132 = vunpack.c.l.b16 %v100
    %v133 = vunpack.c.l.b16 %v101
    %v134 = vunpack.c.l.b16 %v102
    %v135 = vunpack.c.l.b16 %v103
    %v136 = vunpack.c.l.b16 %v104
    %v137 = vunpack.c.l.b16 %v105
    %v138 = vunpack.c.l.b16 %v106
    %v139 = vunpack.c.l.b16 %v107
    %v140 = vunpack.c.l.b16 %v108
    %v141 = vunpack.c.l.b16 %v109
    %v142 = vunpack.c.l.b16 %v110
    %v143 = vunpack.c.l.b16 %v111
    %v144 = vunpack.c.l.b16 %v112
    %v145 = vunpack.c.l.b16 %v113
    %v146 = vunpack.c.l.b16 %v114
    %v147 = vunpack.c.l.b16 %v115
    %v148 = vpack.c.b16 %v133, %v132
    %v149 = vpack.c.b16 %v135, %v134
    %v150 = vpack.c.b16 %v137, %v136
    %v151 = vpack.c.b16 %v139, %v138
    %v152 = vpack.c.b16 %v141, %v140
    %v153 = vpack.c.b16 %v143, %v142
    %v154 = vpack.c.b16 %v145, %v144
    %v155 = vpack.c.b16 %v147, %v146
    %164 = vmatprep.subr.bf16.mxu0 0
    %165 = vmatpush1.bf16.msra.mxu0 %v148
    %166 = vmatprep.subr.bf16.mxu0 0
    %167 = vmatpush1.bf16.msra.mxu0 %v149
    %168 = vmatprep.subr.bf16.mxu0 0
    %169 = vmatpush1.bf16.msra.mxu0 %v150
    %170 = vmatprep.subr.bf16.mxu0 0
    %171 = vmatpush1.bf16.msra.mxu0 %v151
    %172 = vmatprep.subr.bf16.mxu0 0
    %173 = vmatpush1.bf16.msra.mxu0 %v152
    %174 = vmatprep.subr.bf16.mxu0 0
    %175 = vmatpush1.bf16.msra.mxu0 %v153
    %176 = vmatprep.subr.bf16.mxu0 0
    %177 = vmatpush1.bf16.msra.mxu0 %v154
    %178 = vmatprep.subr.bf16.mxu0 0
    %179 = vmatpush1.bf16.msra.mxu0 %v155
    %180 = vmatprep.subr.bf16.mxu0 0
    %181 = vmatpush1.bf16.msra.mxu0 0
    %182 = vmatprep.subr.bf16.mxu0 0
    %183 = vmatpush1.bf16.msra.mxu0 0
    %184 = vmatprep.subr.bf16.mxu0 0
    %185 = vmatpush1.bf16.msra.mxu0 0
    %186 = vmatprep.subr.bf16.mxu0 0
    %187 = vmatpush1.bf16.msra.mxu0 0
    %188 = vmatprep.subr.bf16.mxu0 0
    %189 = vmatpush1.bf16.msra.mxu0 0
    %190 = vmatprep.subr.bf16.mxu0 0
    %191 = vmatpush1.bf16.msra.mxu0 0
    %192 = vmatprep.subr.bf16.mxu0 0
    %193 = vmatpush1.bf16.msra.mxu0 0
    %194 = vmatprep.subr.bf16.mxu0 0
    %195 = vmatpush1.bf16.msra.mxu0 0
    %196 = vmatprep.mubr.bf16.mxu0 0
    %197 = vmatmul.mubr.bf16.gmra.mrb[0].mxu0 %v99
    %v198 = vpop.f32.mrb[0].mxu0
    %v199 = vadd.f32 0.0, %v198
    %v200 = vpop.f32.mrb[0].mxu0
    %v201 = vpop.f32.mrb[0].mxu0
    %v202 = vadd.f32 0.0, %v201
    %v203 = vpop.f32.mrb[0].mxu0
    %204 = vdwg.mxu0
    %v205 = vpack.c.bf16 %v202, %v199
    %v206 = vld [vmem:[%s3 + $0x1] sm:$0x1]
    %v207 = vpack.c.bf16 %v206, %v206
    %v209 = vpack.i.b16 %v207, %v207
    %v211 = vlaneseq
    %v212 = vshrl.u32 %v211, 7
    %v213 = vsub.s32 0, %v212
    %v214 = vrot.slane %v209, %v213
    %v215 = vadd.bf16 %v205, %v214
    %v216 = vmax.bf16 %v215, 0
    %s217 = scalar_lea.vmem [#allocation2], 64
    %v218 = vld [vmem:[%s217] sm:$0xf]
    %v219 = vld [vmem:[%s217 + $0x4] sm:$0xf]
    %v220 = vld [vmem:[%s217 + $0x8] sm:$0xf]
    %v221 = vld [vmem:[%s217 + $0xc] sm:$0xf]
    %v222 = vld [vmem:[%s217 + $0x10] sm:$0xf]
    %v223 = vld [vmem:[%s217 + $0x14] sm:$0xf]
    %v224 = vld [vmem:[%s217 + $0x18] sm:$0xf]
    %v225 = vld [vmem:[%s217 + $0x1c] sm:$0xf]
    %v226 = vld [vmem:[%s217 + $0x20] sm:$0xf]
    %v227 = vld [vmem:[%s217 + $0x24] sm:$0xf]
    %v228 = vld [vmem:[%s217 + $0x28] sm:$0xf]
    %v229 = vld [vmem:[%s217 + $0x2c] sm:$0xf]
    %v230 = vld [vmem:[%s217 + $0x30] sm:$0xf]
    %v231 = vld [vmem:[%s217 + $0x34] sm:$0xf]
    %v232 = vld [vmem:[%s217 + $0x38] sm:$0xf]
    %v233 = vld [vmem:[%s217 + $0x3c] sm:$0xf]
    %v234 = vld [vmem:[%s3 + $0x2] sm:$0x1]
    %v235 = vlaneseq
    %v236 = vshrl.u32 %v235, 7
    %v237 = vsub.s32 0, %v236
    %v238 = vrot.slane %v234, %v237
    %v255 = vunpack.c.l.b16 %v218
    %v256 = vunpack.c.l.b16 %v219
    %v257 = vunpack.c.l.b16 %v220
    %v258 = vunpack.c.l.b16 %v221
    %v259 = vunpack.c.l.b16 %v222
    %v260 = vunpack.c.l.b16 %v223
    %v261 = vunpack.c.l.b16 %v224
    %v262 = vunpack.c.l.b16 %v225
    %v263 = vunpack.c.l.b16 %v226
    %v264 = vunpack.c.l.b16 %v227
    %v265 = vunpack.c.l.b16 %v228
    %v266 = vunpack.c.l.b16 %v229
    %v267 = vunpack.c.l.b16 %v230
    %v268 = vunpack.c.l.b16 %v231
    %v269 = vunpack.c.l.b16 %v232
    %v270 = vunpack.c.l.b16 %v233
    %v271 = vpack.c.b16 %v256, %v255
    %v272 = vpack.c.b16 %v258, %v257
    %v273 = vpack.c.b16 %v260, %v259
    %v274 = vpack.c.b16 %v262, %v261
    %v275 = vpack.c.b16 %v264, %v263
    %v276 = vpack.c.b16 %v266, %v265
    %v277 = vpack.c.b16 %v268, %v267
    %v278 = vpack.c.b16 %v270, %v269
    %287 = vmatprep.subr.bf16.mxu0 0
    %288 = vmatpush1.bf16.msra.mxu0 %v271
    %289 = vmatprep.subr.bf16.mxu0 0
    %290 = vmatpush1.bf16.msra.mxu0 %v272
    %291 = vmatprep.subr.bf16.mxu0 0
    %292 = vmatpush1.bf16.msra.mxu0 %v273
    %293 = vmatprep.subr.bf16.mxu0 0
    %294 = vmatpush1.bf16.msra.mxu0 %v274
    %295 = vmatprep.subr.bf16.mxu0 0
    %296 = vmatpush1.bf16.msra.mxu0 %v275
    %297 = vmatprep.subr.bf16.mxu0 0
    %298 = vmatpush1.bf16.msra.mxu0 %v276
    %299 = vmatprep.subr.bf16.mxu0 0
    %300 = vmatpush1.bf16.msra.mxu0 %v277
    %301 = vmatprep.subr.bf16.mxu0 0
    %302 = vmatpush1.bf16.msra.mxu0 %v278
    %303 = vmatprep.subr.bf16.mxu0 0
    %304 = vmatpush1.bf16.msra.mxu0 0
    %305 = vmatprep.subr.bf16.mxu0 0
    %306 = vmatpush1.bf16.msra.mxu0 0
    %307 = vmatprep.subr.bf16.mxu0 0
    %308 = vmatpush1.bf16.msra.mxu0 0
    %309 = vmatprep.subr.bf16.mxu0 0
    %310 = vmatpush1.bf16.msra.mxu0 0
    %311 = vmatprep.subr.bf16.mxu0 0
    %312 = vmatpush1.bf16.msra.mxu0 0
    %313 = vmatprep.subr.bf16.mxu0 0
    %314 = vmatpush1.bf16.msra.mxu0 0
    %315 = vmatprep.subr.bf16.mxu0 0
    %316 = vmatpush1.bf16.msra.mxu0 0
    %317 = vmatprep.subr.bf16.mxu0 0
    %318 = vmatpush1.bf16.msra.mxu0 0
    %319 = vmatprep.mubr.bf16.mxu0 0
    %320 = vmatmul.mubr.bf16.gmra.mrb[0].mxu0 %v216
    %v321 = vpop.f32.mrb[0].mxu0
    %v322 = vadd.f32 %v238, %v321
    %v323 = vpop.f32.mrb[0].mxu0
    %v324 = vpop.f32.mrb[0].mxu0
    %v325 = vadd.f32 %v238, %v324
    %v326 = vpop.f32.mrb[0].mxu0
    %327 = vdwg.mxu0
    %v328 = vpack.c.bf16 %v325, %v322
    %v330 = vunpack.c.l.b16 %v328
    %v331 = vunpack.c.h.b16 %v328
    %v332 = vpack.c.b16 %v330, %v330
    %v333 = vpack.c.b16 %v331, %v331
    %336 = vst [vmem:[%s4] sm:$0xf] %v332
    %337 = vst [vmem:[%s4 + $0x4] sm:$0xf] %v333
    // Predicated region
    $region22: #{_dqn_forward_padded.1} parent=1 // pred_check
      _
    $region23: #{_dqn_forward_padded.1} parent=1 // pred_check_branch
      %339 = sbr.rel (0) target = $region25
    $region24: #{_dqn_forward_padded.1} parent=1 // pred_region
      _
    $region25: #{_dqn_forward_padded.1} parent=1 // pred_fallthru
      _
    // Predicated region
    $region26: #{_dqn_forward_padded.1} parent=1 // pred_check
      _
    $region27: #{_dqn_forward_padded.1} parent=1 // pred_check_branch
      %341 = sbr.rel (0) target = $region29
    $region28: #{_dqn_forward_padded.1} parent=1 // pred_region
      _
    $region29: #{_dqn_forward_padded.1} parent=1 // pred_fallthru
      _
    %342 = vsyncpa [#allocation3], 1

</llo_original>
